<compile_context>
chip_gen: v7x
topology: tpu7x:2x2x1
jax: 0.10.0
libtpu: 0.0.40
codegen_flags: <defaults>
</compile_context>

<pallas_src>
import functools

import jax
import jax.numpy as jnp
from jax.experimental import pallas as pl
from jax.experimental.pallas import tpu as pltpu


def _round_up(x, m):
    return (x + m - 1) // m * m


def _discriminator_kernel(x_ref, w1_ref, b1_ref, w2_ref, b2_ref, o_ref, *,
                          compute_bf16):
    # ---- hidden layer: (TB, F) @ (F, H) on the MXU, f32 accumulation ----
    x = x_ref[...]
    w1 = w1_ref[...]
    if compute_bf16:
        # Cast inside the kernel: zero extra HBM traffic, MXU runs at bf16 rate.
        x = x.astype(jnp.bfloat16)
        w1 = w1.astype(jnp.bfloat16)
    h = jnp.dot(x, w1, preferred_element_type=jnp.float32) + b1_ref[...]
    h = jnp.maximum(h, 0.0)                                     # ReLU (f32)

    # ---- 2-class head: softmax([z0, z1]) == [sigmoid(z0-z1), sigmoid(z1-z0)]
    # so the N=2 matmul + softmax reduces to a matvec against the weight diff.
    w_diff = w2_ref[:, 1:2] - w2_ref[:, 0:1]                    # (H, 1)
    b_diff = b2_ref[:, 1:2] - b2_ref[:, 0:1]                    # (1, 1)
    h_mm = h
    if compute_bf16:
        h_mm = h.astype(jnp.bfloat16)
        w_diff = w_diff.astype(jnp.bfloat16)
    z = jnp.dot(h_mm, w_diff, preferred_element_type=jnp.float32) + b_diff  # (TB,1)

    # Stable sigmoid pair: finite for any finite z (garbage rows in a padded
    # ragged batch tile never produce NaN; they are never written back anyway).
    p1 = 1.0 / (1.0 + jnp.exp(-z))                              # softmax[...,1]
    p0 = 1.0 / (1.0 + jnp.exp(z))                               # softmax[...,0]

    tb = x_ref.shape[0]
    col = jax.lax.broadcasted_iota(jnp.int32, (tb, 2), 1)
    o_ref[...] = jnp.where(col == 0, p0, p1).astype(o_ref.dtype)


_VMEM_BUDGET = 48 << 20   # leaves headroom below v7x's 64 MiB physical VMEM


def _vmem_estimate(tb, f, h):
    hp = _round_up(h, 128)
    return (2 * tb * f * 4        # x tile (f32 HBM stream), double-buffered
            + f * hp * 4          # w1 (resident / single-buffered)
            + tb * hp * 4         # h intermediate (f32)
            + 2 * tb * 128 * 4    # lane-padded output tile, double-buffered
            + (1 << 20))          # small operands + slack


def _select_batch_tile(B, block_batch, compute_bf16, f, h):
    """Pick the batch tile: large enough to amortize the ~0.35us grid-step
    overhead, small enough to fit VMEM, >=2 grid steps when B permits (keeps
    both v7x TensorCores busy), aligned for bf16 packing / MXU M-tiling."""
    sub = 16 if compute_bf16 else 8
    half_aligned = (B // 2) // 256 * 256
    if half_aligned >= 256:
        # Big batch: 256-aligned tile, capped so the grid has >=2 steps.
        tb = min(max((block_batch // 256) * 256, 256), half_aligned)
    else:
        tb = min(B, block_batch)
        if tb < B:
            tb = (tb // sub) * sub            # partial tiles obey (8,128) rule
            if tb == 0:
                tb = B                        # tiny batch: one full tile
    # Shrink until the double-buffered working set fits the VMEM budget.
    while _vmem_estimate(tb, f, h) > _VMEM_BUDGET:
        nt = ((tb // 2) // sub) * sub
        if nt < sub:
            break
        tb = nt
    return tb


def discriminator_forward(input_feature, alpha, params, *,
                          block_batch=2048, compute_bf16=True):
    """Pallas forward of Discriminator.

    ReverseLayerF is an identity in the forward pass; `alpha` only scales the
    negated gradient in backward, so it has no forward effect.
    """
    del alpha  # TODO(synk): alpha only affects the backward gradient reversal.
    w1, b1, w2, b2 = params
    B, F = input_feature.shape
    H = w1.shape[1]        # 100
    O = w2.shape[1]        # 2
    assert O == 2, "Discriminator head is 2-class (softmax == sigmoid of logit diff)"

    TB = _select_batch_tile(B, block_batch, compute_bf16, F, H)
    grid = (pl.cdiv(B, TB),)
    vmem_limit = int(min(64 << 20, max(32 << 20, 1.25 * _vmem_estimate(TB, F, H))))

    kernel = functools.partial(_discriminator_kernel, compute_bf16=compute_bf16)
    out_shape = jax.ShapeDtypeStruct((B, O), jnp.float32)

    def build(weight_mode):
        def wspec(shape):
            if weight_mode is None:
                return pl.BlockSpec(shape, lambda i: (0, 0))
            return pl.BlockSpec(shape, lambda i: (0, 0), pipeline_mode=weight_mode)

        return pl.pallas_call(
            kernel,
            out_shape=out_shape,
            grid=grid,
            in_specs=[
                pl.BlockSpec((TB, F), lambda i: (i, 0)),   # streamed batch tiles
                wspec((F, H)),                             # VMEM-resident weights
                wspec((1, H)),
                wspec((H, O)),
                wspec((1, O)),
            ],
            out_specs=pl.BlockSpec((TB, O), lambda i: (i, 0)),
            compiler_params=pltpu.CompilerParams(
                dimension_semantics=("parallel",),         # megacore shard on v7x
                vmem_limit_bytes=vmem_limit),
        )

    try:
        # Single-buffer the constant-index weights (no duplicate VMEM copy).
        return build(pl.Buffered(1))(input_feature, w1, b1, w2, b2)
    except Exception:
        # Fallback if this jax build rejects Buffered(1): default double
        # buffering only duplicates the small weights (<~1 MiB at F=1024).
        return build(None)(input_feature, w1, b1, w2, b2)


def init_params(key, in_features, hidden=100, out=2, dtype=jnp.float32):
    """PyTorch-style Linear init (uniform, bound = 1/sqrt(fan_in)).
    Weights stored pre-transposed: (in, out)."""
    k1, k2, k3, k4 = jax.random.split(key, 4)
    bound1 = 1.0 / (in_features ** 0.5)
    bound2 = 1.0 / (hidden ** 0.5)
    w1 = jax.random.uniform(k1, (in_features, hidden), dtype, -bound1, bound1)
    b1 = jax.random.uniform(k2, (1, hidden), dtype, -bound1, bound1)
    w2 = jax.random.uniform(k3, (hidden, out), dtype, -bound2, bound2)
    b2 = jax.random.uniform(k4, (1, out), dtype, -bound2, bound2)
    return w1, b1, w2, b2


def _reference_forward(x, params):
    w1, b1, w2, b2 = params
    h = jnp.maximum(x @ w1 + b1, 0.0)
    logits = h @ w2 + b2
    return jax.nn.softmax(logits, axis=-1)


if __name__ == "__main__":
    key = jax.random.PRNGKey(0)
    kx, kp = jax.random.split(key)

    batch = 32
    in_features = 128          # small stand-in for the module's 1024 default
    alpha = 0.5

    x = jax.random.normal(kx, (batch, in_features), dtype=jnp.float32)
    params = init_params(kp, in_features)
    ref = _reference_forward(x, params)

    # bf16-compute path, 2 batch tiles of 16 rows (exercises the grid pipeline).
    out = discriminator_forward(x, alpha, params, block_batch=16, compute_bf16=True)
    out = jax.block_until_ready(out)
    assert out.shape == (batch, 2)
    assert jnp.allclose(out, ref, atol=2e-2, rtol=2e-2), "bf16 path mismatch vs reference"
    assert jnp.allclose(jnp.sum(out, axis=-1), 1.0, atol=1e-5)

    # f32 path with a ragged final tile (B=20, TB=8 -> last block is partial).
    xr = x[:20]
    out_r = discriminator_forward(xr, alpha, params, block_batch=8, compute_bf16=False)
    out_r = jax.block_until_ready(out_r)
    ref_r = _reference_forward(xr, params)
    assert out_r.shape == (20, 2)
    assert jnp.allclose(out_r, ref_r, atol=1e-5, rtol=1e-5), "f32 ragged path mismatch"
    assert jnp.allclose(jnp.sum(out_r, axis=-1), 1.0, atol=1e-5)

    # Default config (single full-batch tile at this small size).
    out_d = jax.block_until_ready(discriminator_forward(x, alpha, params))
    assert jnp.allclose(out_d, ref, atol=2e-2, rtol=2e-2)

    print("KERNEL_OK")
</pallas_src>

<mosaic_0001>
module attributes {stable_mosaic.version = 11 : i64} {
  func.func @_discriminator_kernel(%arg0: i32, %arg1: memref<16x128xf32, #tpu.memory_space<vmem>>, %arg2: memref<128x100xf32, #tpu.memory_space<vmem>>, %arg3: memref<1x100xf32, #tpu.memory_space<vmem>>, %arg4: memref<100x2xf32, #tpu.memory_space<vmem>>, %arg5: memref<1x2xf32, #tpu.memory_space<vmem>>, %arg6: memref<16x2xf32, #tpu.memory_space<vmem>>) attributes {dimension_semantics = [#tpu.dimension_semantics<parallel>], iteration_bounds = array<i64: 2>, scalar_prefetch = 0 : i64, scratch_operands = 0 : i64, tpu.core_type = #tpu.core_type<tc>, window_params = [{transform_indices = @transform_0, window_bounds = array<i64: 16, 128>}, {pipeline_mode = #tpu.pipeline_mode<synchronous>, transform_indices = @transform_1, window_bounds = array<i64: 128, 100>}, {pipeline_mode = #tpu.pipeline_mode<synchronous>, transform_indices = @transform_2, window_bounds = array<i64: 1, 100>}, {pipeline_mode = #tpu.pipeline_mode<synchronous>, transform_indices = @transform_3, window_bounds = array<i64: 100, 2>}, {pipeline_mode = #tpu.pipeline_mode<synchronous>, transform_indices = @transform_4, window_bounds = array<i64: 1, 2>}, {transform_indices = @transform_5, window_bounds = array<i64: 16, 2>}]} {
    %c0 = arith.constant 0 : index
    %c0_0 = arith.constant 0 : index
    %0 = vector.load %arg1[%c0, %c0_0] : memref<16x128xf32, #tpu.memory_space<vmem>>, vector<16x128xf32>
    %c0_1 = arith.constant 0 : index
    %c0_2 = arith.constant 0 : index
    %1 = vector.load %arg2[%c0_1, %c0_2] : memref<128x100xf32, #tpu.memory_space<vmem>>, vector<128x100xf32>
    %2 = arith.truncf %0 : vector<16x128xf32> to vector<16x128xbf16>
    %3 = arith.truncf %1 : vector<128x100xf32> to vector<128x100xbf16>
    %cst = arith.constant dense<0.000000e+00> : vector<16x100xf32>
    %4 = tpu.matmul %2, %3, %cst {dimension_numbers = #tpu.dot_dimension_numbers<[1], [0], [0], [1], [0, 0, 1, 1], [], []>} : vector<16x128xbf16>, vector<128x100xbf16>, vector<16x100xf32> -> vector<16x100xf32>
    %c0_3 = arith.constant 0 : index
    %c0_4 = arith.constant 0 : index
    %5 = vector.load %arg3[%c0_3, %c0_4] : memref<1x100xf32, #tpu.memory_space<vmem>>, vector<1x100xf32>
    %6 = vector.broadcast %5 : vector<1x100xf32> to vector<16x100xf32>
    %7 = arith.addf %4, %6 : vector<16x100xf32>
    %cst_5 = arith.constant 0.000000e+00 : f32
    %8 = vector.broadcast %cst_5 : f32 to vector<16x100xf32>
    %9 = arith.maximumf %7, %8 : vector<16x100xf32>
    %c0_6 = arith.constant 0 : index
    %c1 = arith.constant 1 : index
    %10 = vector.load %arg4[%c0_6, %c1] : memref<100x2xf32, #tpu.memory_space<vmem>>, vector<100x1xf32>
    %c0_7 = arith.constant 0 : index
    %c0_8 = arith.constant 0 : index
    %11 = vector.load %arg4[%c0_7, %c0_8] : memref<100x2xf32, #tpu.memory_space<vmem>>, vector<100x1xf32>
    %12 = arith.subf %10, %11 : vector<100x1xf32>
    %c0_9 = arith.constant 0 : index
    %c1_10 = arith.constant 1 : index
    %13 = vector.load %arg5[%c0_9, %c1_10] : memref<1x2xf32, #tpu.memory_space<vmem>>, vector<1x1xf32>
    %c0_11 = arith.constant 0 : index
    %c0_12 = arith.constant 0 : index
    %14 = vector.load %arg5[%c0_11, %c0_12] : memref<1x2xf32, #tpu.memory_space<vmem>>, vector<1x1xf32>
    %15 = arith.subf %13, %14 : vector<1x1xf32>
    %16 = arith.truncf %9 : vector<16x100xf32> to vector<16x100xbf16>
    %17 = arith.truncf %12 : vector<100x1xf32> to vector<100x1xbf16>
    %cst_13 = arith.constant dense<0.000000e+00> : vector<16x1xf32>
    %18 = tpu.matmul %16, %17, %cst_13 {dimension_numbers = #tpu.dot_dimension_numbers<[1], [0], [0], [1], [0, 0, 1, 1], [], []>} : vector<16x100xbf16>, vector<100x1xbf16>, vector<16x1xf32> -> vector<16x1xf32>
    %19 = vector.broadcast %15 : vector<1x1xf32> to vector<16x1xf32>
    %20 = arith.addf %18, %19 : vector<16x1xf32>
    %cst_14 = arith.constant 0.000000e+00 : f32
    %21 = vector.broadcast %cst_14 : f32 to vector<16x1xf32>
    %22 = arith.subf %21, %20 : vector<16x1xf32>
    %23 = math.exp %22 : vector<16x1xf32>
    %cst_15 = arith.constant 1.000000e+00 : f32
    %24 = vector.broadcast %cst_15 : f32 to vector<16x1xf32>
    %25 = arith.addf %24, %23 : vector<16x1xf32>
    %cst_16 = arith.constant 1.000000e+00 : f32
    %26 = vector.broadcast %cst_16 : f32 to vector<16x1xf32>
    %27 = arith.divf %26, %25 : vector<16x1xf32>
    %28 = math.exp %20 : vector<16x1xf32>
    %cst_17 = arith.constant 1.000000e+00 : f32
    %29 = vector.broadcast %cst_17 : f32 to vector<16x1xf32>
    %30 = arith.addf %29, %28 : vector<16x1xf32>
    %cst_18 = arith.constant 1.000000e+00 : f32
    %31 = vector.broadcast %cst_18 : f32 to vector<16x1xf32>
    %32 = arith.divf %31, %30 : vector<16x1xf32>
    %33 = tpu.iota {dimensions = array<i32: 1>} : vector<16x2xi32>
    %c0_i32 = arith.constant 0 : i32
    %34 = vector.broadcast %c0_i32 : i32 to vector<16x2xi32>
    %35 = arith.cmpi eq, %33, %34 : vector<16x2xi32>
    %36 = vector.shape_cast %32 : vector<16x1xf32> to vector<16x1xf32>
    %37 = vector.broadcast %36 : vector<16x1xf32> to vector<16x2xf32>
    %38 = vector.shape_cast %27 : vector<16x1xf32> to vector<16x1xf32>
    %39 = vector.broadcast %38 : vector<16x1xf32> to vector<16x2xf32>
    %40 = arith.select %35, %37, %39 : vector<16x2xi1>, vector<16x2xf32>
    %c0_19 = arith.constant 0 : index
    %c0_20 = arith.constant 0 : index
    %41 = vector.load %arg6[%c0_19, %c0_20] : memref<16x2xf32, #tpu.memory_space<vmem>>, vector<16x2xf32>
    tpu.vector_store %arg6[%c0_19, %c0_20], %40 {strides = array<i32>} : memref<16x2xf32, #tpu.memory_space<vmem>>, vector<16x2xf32>,
    return
  }
  func.func @transform_0(%arg0: i32) -> (i32, i32) {
    %c0_i32 = arith.constant 0 : i32
    %c0_i32_0 = arith.constant 0 : i32
    return %arg0, %c0_i32 : i32, i32
  }
  func.func @transform_1(%arg0: i32) -> (i32, i32) {
    %c0_i32 = arith.constant 0 : i32
    %c0_i32_0 = arith.constant 0 : i32
    %c0_i32_1 = arith.constant 0 : i32
    return %c0_i32, %c0_i32_0 : i32, i32
  }
  func.func @transform_2(%arg0: i32) -> (i32, i32) {
    %c0_i32 = arith.constant 0 : i32
    %c0_i32_0 = arith.constant 0 : i32
    %c0_i32_1 = arith.constant 0 : i32
    return %c0_i32, %c0_i32_0 : i32, i32
  }
  func.func @transform_3(%arg0: i32) -> (i32, i32) {
    %c0_i32 = arith.constant 0 : i32
    %c0_i32_0 = arith.constant 0 : i32
    %c0_i32_1 = arith.constant 0 : i32
    return %c0_i32, %c0_i32_0 : i32, i32
  }
  func.func @transform_4(%arg0: i32) -> (i32, i32) {
    %c0_i32 = arith.constant 0 : i32
    %c0_i32_0 = arith.constant 0 : i32
    %c0_i32_1 = arith.constant 0 : i32
    return %c0_i32, %c0_i32_0 : i32, i32
  }
  func.func @transform_5(%arg0: i32) -> (i32, i32) {
    %c0_i32 = arith.constant 0 : i32
    %c0_i32_0 = arith.constant 0 : i32
    return %arg0, %c0_i32 : i32, i32
  }
}

module attributes {stable_mosaic.version = 11 : i64} {
  func.func @_discriminator_kernel(%arg0: i32, %arg1: memref<16x128xf32, #tpu.memory_space<vmem>>, %arg2: memref<128x100xf32, #tpu.memory_space<vmem>>, %arg3: memref<1x100xf32, #tpu.memory_space<vmem>>, %arg4: memref<100x2xf32, #tpu.memory_space<vmem>>, %arg5: memref<1x2xf32, #tpu.memory_space<vmem>>, %arg6: memref<16x2xf32, #tpu.memory_space<vmem>>) attributes {dimension_semantics = [#tpu.dimension_semantics<parallel>], iteration_bounds = array<i64: 2>, scalar_prefetch = 0 : i64, scratch_operands = 0 : i64, tpu.core_type = #tpu.core_type<tc>, window_params = [{transform_indices = @transform_0, window_bounds = array<i64: 16, 128>}, {pipeline_mode = #tpu.pipeline_mode<synchronous>, transform_indices = @transform_1, window_bounds = array<i64: 128, 100>}, {pipeline_mode = #tpu.pipeline_mode<synchronous>, transform_indices = @transform_2, window_bounds = array<i64: 1, 100>}, {pipeline_mode = #tpu.pipeline_mode<synchronous>, transform_indices = @transform_3, window_bounds = array<i64: 100, 2>}, {pipeline_mode = #tpu.pipeline_mode<synchronous>, transform_indices = @transform_4, window_bounds = array<i64: 1, 2>}, {transform_indices = @transform_5, window_bounds = array<i64: 16, 2>}]} {
    %c0 = arith.constant 0 : index
    %c0_0 = arith.constant 0 : index
    %0 = vector.load %arg1[%c0, %c0_0] : memref<16x128xf32, #tpu.memory_space<vmem>>, vector<16x128xf32>
    %c0_1 = arith.constant 0 : index
    %c0_2 = arith.constant 0 : index
    %1 = vector.load %arg2[%c0_1, %c0_2] : memref<128x100xf32, #tpu.memory_space<vmem>>, vector<128x100xf32>
    %2 = arith.truncf %0 : vector<16x128xf32> to vector<16x128xbf16>
    %3 = arith.truncf %1 : vector<128x100xf32> to vector<128x100xbf16>
    %cst = arith.constant dense<0.000000e+00> : vector<16x100xf32>
    %4 = tpu.matmul %2, %3, %cst {dimension_numbers = #tpu.dot_dimension_numbers<[1], [0], [0], [1], [0, 0, 1, 1], [], []>} : vector<16x128xbf16>, vector<128x100xbf16>, vector<16x100xf32> -> vector<16x100xf32>
    %c0_3 = arith.constant 0 : index
    %c0_4 = arith.constant 0 : index
    %5 = vector.load %arg3[%c0_3, %c0_4] : memref<1x100xf32, #tpu.memory_space<vmem>>, vector<1x100xf32>
    %6 = vector.broadcast %5 : vector<1x100xf32> to vector<16x100xf32>
    %7 = arith.addf %4, %6 : vector<16x100xf32>
    %cst_5 = arith.constant 0.000000e+00 : f32
    %8 = vector.broadcast %cst_5 : f32 to vector<16x100xf32>
    %9 = arith.maximumf %7, %8 : vector<16x100xf32>
    %c0_6 = arith.constant 0 : index
    %c1 = arith.constant 1 : index
    %10 = vector.load %arg4[%c0_6, %c1] : memref<100x2xf32, #tpu.memory_space<vmem>>, vector<100x1xf32>
    %c0_7 = arith.constant 0 : index
    %c0_8 = arith.constant 0 : index
    %11 = vector.load %arg4[%c0_7, %c0_8] : memref<100x2xf32, #tpu.memory_space<vmem>>, vector<100x1xf32>
    %12 = arith.subf %10, %11 : vector<100x1xf32>
    %c0_9 = arith.constant 0 : index
    %c1_10 = arith.constant 1 : index
    %13 = vector.load %arg5[%c0_9, %c1_10] : memref<1x2xf32, #tpu.memory_space<vmem>>, vector<1x1xf32>
    %c0_11 = arith.constant 0 : index
    %c0_12 = arith.constant 0 : index
    %14 = vector.load %arg5[%c0_11, %c0_12] : memref<1x2xf32, #tpu.memory_space<vmem>>, vector<1x1xf32>
    %15 = arith.subf %13, %14 : vector<1x1xf32>
    %16 = arith.truncf %9 : vector<16x100xf32> to vector<16x100xbf16>
    %17 = arith.truncf %12 : vector<100x1xf32> to vector<100x1xbf16>
    %cst_13 = arith.constant dense<0.000000e+00> : vector<16x1xf32>
    %18 = tpu.matmul %16, %17, %cst_13 {dimension_numbers = #tpu.dot_dimension_numbers<[1], [0], [0], [1], [0, 0, 1, 1], [], []>} : vector<16x100xbf16>, vector<100x1xbf16>, vector<16x1xf32> -> vector<16x1xf32>
    %19 = vector.broadcast %15 : vector<1x1xf32> to vector<16x1xf32>
    %20 = arith.addf %18, %19 : vector<16x1xf32>
    %cst_14 = arith.constant 0.000000e+00 : f32
    %21 = vector.broadcast %cst_14 : f32 to vector<16x1xf32>
    %22 = arith.subf %21, %20 : vector<16x1xf32>
    %23 = math.exp %22 : vector<16x1xf32>
    %cst_15 = arith.constant 1.000000e+00 : f32
    %24 = vector.broadcast %cst_15 : f32 to vector<16x1xf32>
    %25 = arith.addf %24, %23 : vector<16x1xf32>
    %cst_16 = arith.constant 1.000000e+00 : f32
    %26 = vector.broadcast %cst_16 : f32 to vector<16x1xf32>
    %27 = arith.divf %26, %25 : vector<16x1xf32>
    %28 = math.exp %20 : vector<16x1xf32>
    %cst_17 = arith.constant 1.000000e+00 : f32
    %29 = vector.broadcast %cst_17 : f32 to vector<16x1xf32>
    %30 = arith.addf %29, %28 : vector<16x1xf32>
    %cst_18 = arith.constant 1.000000e+00 : f32
    %31 = vector.broadcast %cst_18 : f32 to vector<16x1xf32>
    %32 = arith.divf %31, %30 : vector<16x1xf32>
    %33 = tpu.iota {dimensions = array<i32: 1>} : vector<16x2xi32>
    %c0_i32 = arith.constant 0 : i32
    %34 = vector.broadcast %c0_i32 : i32 to vector<16x2xi32>
    %35 = arith.cmpi eq, %33, %34 : vector<16x2xi32>
    %36 = vector.shape_cast %32 : vector<16x1xf32> to vector<16x1xf32>
    %37 = vector.broadcast %36 : vector<16x1xf32> to vector<16x2xf32>
    %38 = vector.shape_cast %27 : vector<16x1xf32> to vector<16x1xf32>
    %39 = vector.broadcast %38 : vector<16x1xf32> to vector<16x2xf32>
    %40 = arith.select %35, %37, %39 : vector<16x2xi1>, vector<16x2xf32>
    %c0_19 = arith.constant 0 : index
    %c0_20 = arith.constant 0 : index
    %41 = vector.load %arg6[%c0_19, %c0_20] : memref<16x2xf32, #tpu.memory_space<vmem>>, vector<16x2xf32>
    tpu.vector_store %arg6[%c0_19, %c0_20], %40 {strides = array<i32>} : memref<16x2xf32, #tpu.memory_space<vmem>>, vector<16x2xf32>,
    return
  }
  func.func @transform_0(%arg0: i32) -> (i32, i32) {
    %c0_i32 = arith.constant 0 : i32
    %c0_i32_0 = arith.constant 0 : i32
    return %arg0, %c0_i32 : i32, i32
  }
  func.func @transform_1(%arg0: i32) -> (i32, i32) {
    %c0_i32 = arith.constant 0 : i32
    %c0_i32_0 = arith.constant 0 : i32
    %c0_i32_1 = arith.constant 0 : i32
    return %c0_i32, %c0_i32_0 : i32, i32
  }
  func.func @transform_2(%arg0: i32) -> (i32, i32) {
    %c0_i32 = arith.constant 0 : i32
    %c0_i32_0 = arith.constant 0 : i32
    %c0_i32_1 = arith.constant 0 : i32
    return %c0_i32, %c0_i32_0 : i32, i32
  }
  func.func @transform_3(%arg0: i32) -> (i32, i32) {
    %c0_i32 = arith.constant 0 : i32
    %c0_i32_0 = arith.constant 0 : i32
    %c0_i32_1 = arith.constant 0 : i32
    return %c0_i32, %c0_i32_0 : i32, i32
  }
  func.func @transform_4(%arg0: i32) -> (i32, i32) {
    %c0_i32 = arith.constant 0 : i32
    %c0_i32_0 = arith.constant 0 : i32
    %c0_i32_1 = arith.constant 0 : i32
    return %c0_i32, %c0_i32_0 : i32, i32
  }
  func.func @transform_5(%arg0: i32) -> (i32, i32) {
    %c0_i32 = arith.constant 0 : i32
    %c0_i32_0 = arith.constant 0 : i32
    return %arg0, %c0_i32 : i32, i32
  }
}

</mosaic_0001>

<llo_original>
// kernel: tpu_custom_call.1
$region0: #{tpu_custom_call.1}
  #allocation0 [shape = 'u32[]', space=smem, size = 0x4, offset = 0x4, fixed_abs, tag = 'smem constant byte address 0x4 - core index']
  #allocation1 [shape = 'u32[144,128]{1,0:T(1,128)}', space=vmem, size = 0x12000, scoped, tag = 'internal scratch']
  %s0 = inlined_call_operand.vmem [shape: f32[32,128], index: 0, kind: input, shape index: {}]
  %s1 = inlined_call_operand.vmem [shape: f32[128,100], index: 1, kind: input, shape index: {}]
  %s2 = inlined_call_operand.vmem [shape: f32[1,100], index: 2, kind: input, shape index: {}]
  %s3 = inlined_call_operand.vmem [shape: f32[100,2], index: 3, kind: input, shape index: {}]
  %s4 = inlined_call_operand.vmem [shape: f32[1,2], index: 4, kind: input, shape index: {}]
  %s5 = inlined_call_operand.vmem [shape: f32[32,2], index: 5, kind: output, shape index: {}]
  %s6 = sld [smem:[#allocation0]]
  $region53: #{tpu_custom_call.1} parent=0
    _
  %s8 = ssub.s32 1, %s6
  %s9 = scalar_select 0, %s8, %s6
  loop: start=0, step=1, limit=4
  $region2: #{tpu_custom_call.1} parent=0 // loop_pre_header
    _
  $region3: #{tpu_custom_call.1} parent=0 // loop_header
    %s11 = sphi 0, %s15
    %p12 = scmp.ge.s32.totalorder %s11, 4
    %s21 = sphi 0, %s23
    %s24 = sphi 0, %s21
    %s25 = sphi 0, %s24
    %s41 = sphi 0, %s25
    %s45 = sphi 0, %s45
    %s47 = sphi 0, %s45
    %s48 = sphi 0, %s47
    %s62 = sphi 0, %s48
    %s66 = sphi 0, %s66
    %s68 = sphi 0, %s66
    %s69 = sphi 0, %s68
    %s83 = sphi 0, %s69
    %s87 = sphi 0, %s87
    %s89 = sphi 0, %s87
    %s90 = sphi 0, %s89
    %s104 = sphi 0, %s90
    %s108 = sphi 0, %s108
    %s110 = sphi 0, %s108
    %s111 = sphi 0, %s110
    %s125 = sphi 0, %s111
    %s131 = sphi 0, %s133
    %s134 = sphi 0, %s131
    %s135 = sphi 0, %s134
    %s151 = sphi 0, %s135
  $region4: #{tpu_custom_call.1} parent=0 // loop_header_branch
    %14 = sbr.rel (%p12) target = $region8
  $region5: #{tpu_custom_call.1} parent=0 // loop_body
    %s16 = ssub.s32 %s11, 1
    %s17 = ssub.s32 %s11, 2
    %s18 = sadd.s32 %s11, 1
    %s19 = ssub.s32 %s11, %s18
    %p20 = scmp.eq.s32.totalorder %s19, 0
    %s22 = sadd.s32 %s21, 1
    %s23 = scalar_select %p20, %s21, %s22
    %p26 = pneg %p20
    %p27 = scmp.eq.s32.totalorder %s11, 1
    %p28 = por %p26, %p27
    %p29 = scmp.ne.s32.totalorder %s21, %s24
    %p30 = scmp.eq.s32.totalorder %s11, 0
    %p31 = por %p29, %p30
    %p32 = scmp.ne.s32.totalorder %s21, %s24
    %p33 = scmp.eq.s32.totalorder %s16, 1
    %p34 = por %p32, %p33
    %p35 = scmp.ne.s32.totalorder %s24, %s25
    %p36 = scmp.eq.s32.totalorder %s16, 0
    %p37 = por %p35, %p36
    %p38 = scmp.ne.s32.totalorder %s24, %s25
    %p39 = scmp.eq.s32.totalorder %s17, 1
    %p40 = por %p38, %p39
    %p42 = scmp.ne.s32.totalorder %s25, %s41
    %p43 = scmp.eq.s32.totalorder %s17, 0
    %p44 = por %p42, %p43
    %s46 = sadd.s32 %s45, 1
    %p49 = scmp.eq.s32.totalorder %s11, 1
    %p50 = scmp.ne.s32.totalorder %s45, %s47
    %p51 = scmp.eq.s32.totalorder %s11, 0
    %p52 = por %p50, %p51
    %p53 = scmp.ne.s32.totalorder %s45, %s47
    %p54 = scmp.eq.s32.totalorder %s16, 1
    %p55 = por %p53, %p54
    %p56 = scmp.ne.s32.totalorder %s47, %s48
    %p57 = scmp.eq.s32.totalorder %s16, 0
    %p58 = por %p56, %p57
    %p59 = scmp.ne.s32.totalorder %s47, %s48
    %p60 = scmp.eq.s32.totalorder %s17, 1
    %p61 = por %p59, %p60
    %p63 = scmp.ne.s32.totalorder %s48, %s62
    %p64 = scmp.eq.s32.totalorder %s17, 0
    %p65 = por %p63, %p64
    %s67 = sadd.s32 %s66, 1
    %p70 = scmp.eq.s32.totalorder %s11, 1
    %p71 = scmp.ne.s32.totalorder %s66, %s68
    %p72 = scmp.eq.s32.totalorder %s11, 0
    %p73 = por %p71, %p72
    %p74 = scmp.ne.s32.totalorder %s66, %s68
    %p75 = scmp.eq.s32.totalorder %s16, 1
    %p76 = por %p74, %p75
    %p77 = scmp.ne.s32.totalorder %s68, %s69
    %p78 = scmp.eq.s32.totalorder %s16, 0
    %p79 = por %p77, %p78
    %p80 = scmp.ne.s32.totalorder %s68, %s69
    %p81 = scmp.eq.s32.totalorder %s17, 1
    %p82 = por %p80, %p81
    %p84 = scmp.ne.s32.totalorder %s69, %s83
    %p85 = scmp.eq.s32.totalorder %s17, 0
    %p86 = por %p84, %p85
    %s88 = sadd.s32 %s87, 1
    %p91 = scmp.eq.s32.totalorder %s11, 1
    %p92 = scmp.ne.s32.totalorder %s87, %s89
    %p93 = scmp.eq.s32.totalorder %s11, 0
    %p94 = por %p92, %p93
    %p95 = scmp.ne.s32.totalorder %s87, %s89
    %p96 = scmp.eq.s32.totalorder %s16, 1
    %p97 = por %p95, %p96
    %p98 = scmp.ne.s32.totalorder %s89, %s90
    %p99 = scmp.eq.s32.totalorder %s16, 0
    %p100 = por %p98, %p99
    %p101 = scmp.ne.s32.totalorder %s89, %s90
    %p102 = scmp.eq.s32.totalorder %s17, 1
    %p103 = por %p101, %p102
    %p105 = scmp.ne.s32.totalorder %s90, %s104
    %p106 = scmp.eq.s32.totalorder %s17, 0
    %p107 = por %p105, %p106
    %s109 = sadd.s32 %s108, 1
    %p112 = scmp.eq.s32.totalorder %s11, 1
    %p113 = scmp.ne.s32.totalorder %s108, %s110
    %p114 = scmp.eq.s32.totalorder %s11, 0
    %p115 = por %p113, %p114
    %p116 = scmp.ne.s32.totalorder %s108, %s110
    %p117 = scmp.eq.s32.totalorder %s16, 1
    %p118 = por %p116, %p117
    %p119 = scmp.ne.s32.totalorder %s110, %s111
    %p120 = scmp.eq.s32.totalorder %s16, 0
    %p121 = por %p119, %p120
    %p122 = scmp.ne.s32.totalorder %s110, %s111
    %p123 = scmp.eq.s32.totalorder %s17, 1
    %p124 = por %p122, %p123
    %p126 = scmp.ne.s32.totalorder %s111, %s125
    %p127 = scmp.eq.s32.totalorder %s17, 0
    %p128 = por %p126, %p127
    %s129 = ssub.s32 %s11, %s18
    %p130 = scmp.eq.s32.totalorder %s129, 0
    %s132 = sadd.s32 %s131, 1
    %s133 = scalar_select %p130, %s131, %s132
    %p136 = pneg %p130
    %p137 = scmp.eq.s32.totalorder %s11, 1
    %p138 = por %p136, %p137
    %p139 = scmp.ne.s32.totalorder %s131, %s134
    %p140 = scmp.eq.s32.totalorder %s11, 0
    %p141 = por %p139, %p140
    %p142 = scmp.ne.s32.totalorder %s131, %s134
    %p143 = scmp.eq.s32.totalorder %s16, 1
    %p144 = por %p142, %p143
    %p145 = scmp.ne.s32.totalorder %s134, %s135
    %p146 = scmp.eq.s32.totalorder %s16, 0
    %p147 = por %p145, %p146
    %p148 = scmp.ne.s32.totalorder %s134, %s135
    %p149 = scmp.eq.s32.totalorder %s17, 1
    %p150 = por %p148, %p149
    %p152 = scmp.ne.s32.totalorder %s135, %s151
    %p153 = scmp.eq.s32.totalorder %s17, 0
    %p154 = por %p152, %p153
    %p155 = scmp.le.s32.totalorder 1, %s11
    %p156 = scmp.lt.s32.totalorder %s11, 3
    %p157 = pnand %p155, %p156
    %p158 = pneg %p157
    // Predicated region
    $region9: #{tpu_custom_call.1} parent=5 // pred_check
      _
    $region10: #{tpu_custom_call.1} parent=5 // pred_check_branch
      %160 = sbr.rel (%p157) target = $region12
    $region11: #{tpu_custom_call.1} parent=5 // pred_region
      %s161 = ssub.s32 %s11, 1
      // Predicated region
      $region13: #{tpu_custom_call.1} parent=11 // pred_check
        %p162 = pneg %p58
      $region14: #{tpu_custom_call.1} parent=11 // pred_check_branch
        %164 = sbr.rel (%p162) target = $region16
      $region15: #{tpu_custom_call.1} parent=11 // pred_region
        _
      $region16: #{tpu_custom_call.1} parent=11 // pred_fallthru
        _
      // Predicated region
      $region17: #{tpu_custom_call.1} parent=11 // pred_check
        %p165 = pneg %p79
      $region18: #{tpu_custom_call.1} parent=11 // pred_check_branch
        %167 = sbr.rel (%p165) target = $region20
      $region19: #{tpu_custom_call.1} parent=11 // pred_region
        _
      $region20: #{tpu_custom_call.1} parent=11 // pred_fallthru
        _
      // Predicated region
      $region21: #{tpu_custom_call.1} parent=11 // pred_check
        %p168 = pneg %p100
      $region22: #{tpu_custom_call.1} parent=11 // pred_check_branch
        %170 = sbr.rel (%p168) target = $region24
      $region23: #{tpu_custom_call.1} parent=11 // pred_region
        _
      $region24: #{tpu_custom_call.1} parent=11 // pred_fallthru
        _
      // Predicated region
      $region25: #{tpu_custom_call.1} parent=11 // pred_check
        %p171 = pneg %p121
      $region26: #{tpu_custom_call.1} parent=11 // pred_check_branch
        %173 = sbr.rel (%p171) target = $region28
      $region27: #{tpu_custom_call.1} parent=11 // pred_region
        _
      $region28: #{tpu_custom_call.1} parent=11 // pred_fallthru
        _
    $region12: #{tpu_custom_call.1} parent=5 // pred_fallthru
      _
    %p174 = scmp.lt.s32.totalorder %s11, 2
    // Predicated region
    $region29: #{tpu_custom_call.1} parent=5 // pred_check
      %p175 = pneg %p174
    $region30: #{tpu_custom_call.1} parent=5 // pred_check_branch
      %177 = sbr.rel (%p175) target = $region32
    $region31: #{tpu_custom_call.1} parent=5 // pred_region
      // Predicated region
      $region33: #{tpu_custom_call.1} parent=31 // pred_check
        %p178 = pneg %p31
      $region34: #{tpu_custom_call.1} parent=31 // pred_check_branch
        %180 = sbr.rel (%p178) target = $region36
      $region35: #{tpu_custom_call.1} parent=31 // pred_region
        %s181 = smul.u32 2, %s11
        %p182 = scmp.lt.s32.totalorder %s181, 3
        %s183 = scalar_select %p182, %s181, 3
        %s184 = smul.addr %s183, 8
        %s185 = scalar_lea.vmem %s0, %s184
        %s186 = smul.u32 2, %s11
      $region36: #{tpu_custom_call.1} parent=31 // pred_fallthru
        _
    $region32: #{tpu_custom_call.1} parent=5 // pred_fallthru
      _
    %p187 = scmp.le.s32.totalorder 1, %s11
    %p188 = scmp.lt.s32.totalorder %s11, 3
    %p189 = pnand %p187, %p188
    %p190 = pneg %p189
    // Predicated region
    $region37: #{tpu_custom_call.1} parent=5 // pred_check
      _
    $region38: #{tpu_custom_call.1} parent=5 // pred_check_branch
      %192 = sbr.rel (%p189) target = $region40
    $region39: #{tpu_custom_call.1} parent=5 // pred_region
      %s193 = ssub.s32 %s11, 1
      %s194 = smul.u32 2, %s16
      %p195 = scmp.lt.s32.totalorder %s194, 3
      %s196 = scalar_select %p195, %s194, 3
      %s197 = smul.addr %s196, 8
      %s198 = scalar_lea.vmem %s0, %s197
      %p199 = pneg %p37
      %p200 = pneg %p34
      %p201 = pneg %p58
      %p202 = pneg %p55
      %p203 = pneg %p79
      %p204 = pneg %p76
      %p205 = pneg %p100
      %p206 = pneg %p97
      %p207 = pneg %p121
      %p208 = pneg %p118
      %p209 = pneg %p147
      %p210 = pneg %p144
      %s211 = smul.u32 2, %s16
      %p212 = scmp.lt.s32.totalorder %s211, 3
      %s213 = scalar_select %p212, %s211, 3
      %s214 = smul.addr %s213, 8
      %s215 = scalar_lea.vmem %s5, %s214
      %s216 = smul.u32 2, %s16
      %p217 = scmp.lt.s32.totalorder %s216, 3
      %s218 = scalar_select %p217, %s216, 3
      %s219 = smul.addr %s218, 8
      %s220 = scalar_lea.vmem %s0, %s219
      %s221 = smul.u32 2, %s16
      %s222 = smul.u32 2, %s16
      %p223 = scmp.lt.s32.totalorder %s222, 3
      %s224 = scalar_select %p223, %s222, 3
      %s225 = smul.addr %s224, 8
      %s226 = scalar_lea.vmem %s5, %s225
      %s227 = smul.u32 2, %s16
      %v229 = vld [vmem:[%s220] sm:$0xff]
      %v230 = vld [vmem:[%s220 + $0x8] sm:$0xff]
      %v231 = vld [vmem:[%s1] sm:$0xff]
      %v232 = vld [vmem:[%s1 + $0x8] sm:$0xff]
      %v233 = vld [vmem:[%s1 + $0x10] sm:$0xff]
      %v234 = vld [vmem:[%s1 + $0x18] sm:$0xff]
      %v235 = vld [vmem:[%s1 + $0x20] sm:$0xff]
      %v236 = vld [vmem:[%s1 + $0x28] sm:$0xff]
      %v237 = vld [vmem:[%s1 + $0x30] sm:$0xff]
      %v238 = vld [vmem:[%s1 + $0x38] sm:$0xff]
      %v239 = vld [vmem:[%s1 + $0x40] sm:$0xff]
      %v240 = vld [vmem:[%s1 + $0x48] sm:$0xff]
      %v241 = vld [vmem:[%s1 + $0x50] sm:$0xff]
      %v242 = vld [vmem:[%s1 + $0x58] sm:$0xff]
      %v243 = vld [vmem:[%s1 + $0x60] sm:$0xff]
      %v244 = vld [vmem:[%s1 + $0x68] sm:$0xff]
      %v245 = vld [vmem:[%s1 + $0x70] sm:$0xff]
      %v246 = vld [vmem:[%s1 + $0x78] sm:$0xff]
      %v247 = vpack.c.bf16 %v230, %v229
      %v248 = vpack.c.bf16 %v232, %v231
      %v249 = vpack.c.bf16 %v234, %v233
      %v250 = vpack.c.bf16 %v236, %v235
      %v251 = vpack.c.bf16 %v238, %v237
      %v252 = vpack.c.bf16 %v240, %v239
      %v253 = vpack.c.bf16 %v242, %v241
      %v254 = vpack.c.bf16 %v244, %v243
      %v255 = vpack.c.bf16 %v246, %v245
      %v256 = vld [vmem:[%s2] sm:$0x1]
      %v258 = vlaneseq
      %v259 = vshrl.u32 %v258, 7
      %v260 = vsub.s32 0, %v259
      %v261 = vrot.slane %v256, %v260
      %263 = vmatprep.subr.bf16.mxu0 0
      %264 = vmatpush1.bf16.msra.mxu0 %v248
      %265 = vmatprep.subr.bf16.mxu0 0
      %266 = vmatpush1.bf16.msra.mxu0 %v249
      %267 = vmatprep.subr.bf16.mxu0 0
      %268 = vmatpush1.bf16.msra.mxu0 %v250
      %269 = vmatprep.subr.bf16.mxu0 0
      %270 = vmatpush1.bf16.msra.mxu0 %v251
      %271 = vmatprep.subr.bf16.mxu0 0
      %272 = vmatpush1.bf16.msra.mxu0 %v252
      %273 = vmatprep.subr.bf16.mxu0 0
      %274 = vmatpush1.bf16.msra.mxu0 %v253
      %275 = vmatprep.subr.bf16.mxu0 0
      %276 = vmatpush1.bf16.msra.mxu0 %v254
      %277 = vmatprep.subr.bf16.mxu0 0
      %278 = vmatpush1.bf16.msra.mxu0 %v255
      %279 = vmatprep.subr.bf16.mxu0 0
      %280 = vmatpush1.bf16.msra.mxu0 0
      %281 = vmatprep.subr.bf16.mxu0 0
      %282 = vmatpush1.bf16.msra.mxu0 0
      %283 = vmatprep.subr.bf16.mxu0 0
      %284 = vmatpush1.bf16.msra.mxu0 0
      %285 = vmatprep.subr.bf16.mxu0 0
      %286 = vmatpush1.bf16.msra.mxu0 0
      %287 = vmatprep.subr.bf16.mxu0 0
      %288 = vmatpush1.bf16.msra.mxu0 0
      %289 = vmatprep.subr.bf16.mxu0 0
      %290 = vmatpush1.bf16.msra.mxu0 0
      %291 = vmatprep.subr.bf16.mxu0 0
      %292 = vmatpush1.bf16.msra.mxu0 0
      %293 = vmatprep.subr.bf16.mxu0 0
      %294 = vmatpush1.bf16.msra.mxu0 0
      %295 = vmatprep.mubr.bf16.mxu0 0
      %296 = vmatmul.mubr.bf16.gmra.mrb[0].mxu0 %v247
      %v297 = vpop.f32.mrb[0].mxu0
      %v298 = vadd.f32 %v261, %v297
      %v299 = vpop.f32.mrb[0].mxu0
      %v300 = vpop.f32.mrb[0].mxu0
      %v301 = vadd.f32 %v261, %v300
      %v302 = vpop.f32.mrb[0].mxu0
      %303 = vdwg.mxu0
      %v304 = vmax.f32 %v298, 0.0
      %v305 = vmax.f32 %v301, 0.0
      %v306 = vld [vmem:[%s3] sm:$0xff]
      %v307 = vld [vmem:[%s3 + $0x8] sm:$0xff]
      %v308 = vld [vmem:[%s3 + $0x10] sm:$0xff]
      %v309 = vld [vmem:[%s3 + $0x18] sm:$0xff]
      %v310 = vld [vmem:[%s3 + $0x20] sm:$0xff]
      %v311 = vld [vmem:[%s3 + $0x28] sm:$0xff]
      %v312 = vld [vmem:[%s3 + $0x30] sm:$0xff]
      %v313 = vld [vmem:[%s3 + $0x38] sm:$0xff]
      %v314 = vld [vmem:[%s3 + $0x40] sm:$0xff]
      %v315 = vld [vmem:[%s3 + $0x48] sm:$0xff]
      %v316 = vld [vmem:[%s3 + $0x50] sm:$0xff]
      %v317 = vld [vmem:[%s3 + $0x58] sm:$0xff]
      %v318 = vld [vmem:[%s3 + $0x60] sm:$0xf]
      %332 = vrot.lane.b32.xlu0 %v306, 1
      %v333 = vpop.permute.xlu0 %332
      %334 = vrot.lane.b32.xlu0 %v307, 1
      %v335 = vpop.permute.xlu0 %334
      %336 = vrot.lane.b32.xlu0 %v308, 1
      %v337 = vpop.permute.xlu0 %336
      %338 = vrot.lane.b32.xlu0 %v309, 1
      %v339 = vpop.permute.xlu0 %338
      %340 = vrot.lane.b32.xlu0 %v310, 1
      %v341 = vpop.permute.xlu0 %340
      %342 = vrot.lane.b32.xlu0 %v311, 1
      %v343 = vpop.permute.xlu0 %342
      %344 = vrot.lane.b32.xlu0 %v312, 1
      %v345 = vpop.permute.xlu0 %344
      %346 = vrot.lane.b32.xlu0 %v313, 1
      %v347 = vpop.permute.xlu0 %346
      %348 = vrot.lane.b32.xlu0 %v314, 1
      %v349 = vpop.permute.xlu0 %348
      %350 = vrot.lane.b32.xlu0 %v315, 1
      %v351 = vpop.permute.xlu0 %350
      %352 = vrot.lane.b32.xlu0 %v316, 1
      %v353 = vpop.permute.xlu0 %352
      %354 = vrot.lane.b32.xlu0 %v317, 1
      %v355 = vpop.permute.xlu0 %354
      %356 = vrot.lane.b32.xlu0 %v318, 1
      %v357 = vpop.permute.xlu0 %356
      %v371 = vsub.f32 %v306, %v333
      %v372 = vsub.f32 %v307, %v335
      %v373 = vsub.f32 %v308, %v337
      %v374 = vsub.f32 %v309, %v339
      %v375 = vsub.f32 %v310, %v341
      %v376 = vsub.f32 %v311, %v343
      %v377 = vsub.f32 %v312, %v345
      %v378 = vsub.f32 %v313, %v347
      %v379 = vsub.f32 %v314, %v349
      %v380 = vsub.f32 %v315, %v351
      %v381 = vsub.f32 %v316, %v353
      %v382 = vsub.f32 %v317, %v355
      %v383 = vsub.f32 %v318, %v357
      %v384 = vld [vmem:[%s4] sm:$0x1]
      %386 = vrot.lane.b32.xlu0 %v384, 1
      %v387 = vpop.permute.xlu0 %386
      %v389 = vsub.f32 %v384, %v387
      %v390 = vpack.c.bf16 %v305, %v304
      %v391 = vpack.c.bf16 %v372, %v371
      %v392 = vpack.c.bf16 %v374, %v373
      %v393 = vpack.c.bf16 %v376, %v375
      %v394 = vpack.c.bf16 %v378, %v377
      %v395 = vpack.c.bf16 %v380, %v379
      %v396 = vpack.c.bf16 %v382, %v381
      %v397 = vpack.c.bf16 %v383, %v383
      %v399 = vlaneseq
      %v400 = vshrl.u32 %v399, 7
      %v401 = vsub.s32 0, %v400
      %v402 = vrot.slane %v389, %v401
      %410 = vrot.lane.b32.xlu0 %v391, 127
      %v411 = vpop.permute.xlu0 %410
      %412 = vrot.lane.b32.xlu0 %v392, 127
      %v413 = vpop.permute.xlu0 %412
      %414 = vrot.lane.b32.xlu0 %v393, 127
      %v415 = vpop.permute.xlu0 %414
      %416 = vrot.lane.b32.xlu0 %v394, 127
      %v417 = vpop.permute.xlu0 %416
      %418 = vrot.lane.b32.xlu0 %v395, 127
      %v419 = vpop.permute.xlu0 %418
      %420 = vrot.lane.b32.xlu0 %v396, 127
      %v421 = vpop.permute.xlu0 %420
      %422 = vrot.lane.b32.xlu0 %v397, 127
      %v423 = vpop.permute.xlu0 %422
      %430 = vrot.lane.b32.xlu0 %v402, 127
      %v431 = vpop.permute.xlu0 %430
      %vm433 = vcmask 818176
      %v435 = vsel %vm433, %v390, 0
      %vm437 = vcmask 1041408
      %v439 = vsel %vm437, %v423, 0
      %441 = vmatprep.subr.bf16.mxu0 0
      %442 = vmatpush1.bf16.msra.mxu0 %v411
      %443 = vmatprep.subr.bf16.mxu0 0
      %444 = vmatpush1.bf16.msra.mxu0 %v413
      %445 = vmatprep.subr.bf16.mxu0 0
      %446 = vmatpush1.bf16.msra.mxu0 %v415
      %447 = vmatprep.subr.bf16.mxu0 0
      %448 = vmatpush1.bf16.msra.mxu0 %v417
      %449 = vmatprep.subr.bf16.mxu0 0
      %450 = vmatpush1.bf16.msra.mxu0 %v419
      %451 = vmatprep.subr.bf16.mxu0 0
      %452 = vmatpush1.bf16.msra.mxu0 %v421
      %453 = vmatprep.subr.bf16.mxu0 0
      %454 = vmatpush1.bf16.msra.mxu0 %v439
      %455 = vmatprep.subr.bf16.mxu0 0
      %456 = vmatpush1.bf16.msra.mxu0 0
      %457 = vmatprep.subr.bf16.mxu0 0
      %458 = vmatpush1.bf16.msra.mxu0 0
      %459 = vmatprep.subr.bf16.mxu0 0
      %460 = vmatpush1.bf16.msra.mxu0 0
      %461 = vmatprep.subr.bf16.mxu0 0
      %462 = vmatpush1.bf16.msra.mxu0 0
      %463 = vmatprep.subr.bf16.mxu0 0
      %464 = vmatpush1.bf16.msra.mxu0 0
      %465 = vmatprep.subr.bf16.mxu0 0
      %466 = vmatpush1.bf16.msra.mxu0 0
      %467 = vmatprep.subr.bf16.mxu0 0
      %468 = vmatpush1.bf16.msra.mxu0 0
      %469 = vmatprep.subr.bf16.mxu0 0
      %470 = vmatpush1.bf16.msra.mxu0 0
      %471 = vmatprep.subr.bf16.mxu0 0
      %472 = vmatpush1.bf16.msra.mxu0 0
      %473 = vmatprep.mubr.bf16.mxu0 0
      %474 = vmatmul.mubr.bf16.gmra.mrb[0].mxu0 %v435
      %v475 = vpop.f32.mrb[0].mxu0
      %v476 = vadd.f32 %v431, %v475
      %v477 = vpop.f32.mrb[0].mxu0
      %v478 = vpop.f32.mrb[0].mxu0
      %v479 = vadd.f32 %v431, %v478
      %v480 = vpop.f32.mrb[0].mxu0
      %481 = vdwg.mxu0
      %v482 = vsub.f32 0.0, %v476
      %v483 = vsub.f32 0.0, %v479
      %v484 = vmul.f32 %v482, 1.442695
      %v485 = vpow.pop %v484
      %v486 = vmul.f32 %v483, 1.442695
      %v487 = vpow.pop %v486
      %v488 = vadd.f32 %v485, 1.0
      %v489 = vadd.f32 %v487, 1.0
      %v490 = vrcp.pop %v488
      %v491 = vmul.f32 1.0, %v490
      %v492 = vrcp.pop %v489
      %v493 = vmul.f32 1.0, %v492
      %v494 = vmul.f32 %v476, 1.442695
      %v495 = vpow.pop %v494
      %v496 = vmul.f32 %v479, 1.442695
      %v497 = vpow.pop %v496
      %v498 = vadd.f32 %v495, 1.0
      %v499 = vadd.f32 %v497, 1.0
      %v500 = vrcp.pop %v498
      %v501 = vmul.f32 1.0, %v500
      %v502 = vrcp.pop %v499
      %v503 = vmul.f32 1.0, %v502
      %v504 = vlaneseq
      %v505 = vand.u32 %v504, 127
      %vm506 = vcmp.eq.s32.totalorder %v505, 0
      %508 = vset.pattern.permute.xlu0 0
      %509 = vperm.xlu0 %508, %v501
      %v510 = vpop.permute.xlu0 %509
      %513 = vset.pattern.permute.xlu0 0
      %514 = vperm.xlu0 %513, %v503
      %v515 = vpop.permute.xlu0 %514
      %518 = vset.pattern.permute.xlu0 0
      %519 = vperm.xlu0 %518, %v491
      %v520 = vpop.permute.xlu0 %519
      %523 = vset.pattern.permute.xlu0 0
      %524 = vperm.xlu0 %523, %v493
      %v525 = vpop.permute.xlu0 %524
      %v527 = vsel %vm506, %v510, %v520
      %v528 = vsel %vm506, %v515, %v525
      %vm529 = vcmask 15360
      %530 = vst.msk [vmem:[%s226] sm:$0xff] %vm529, %v527
      %531 = vst.msk [vmem:[%s226 + $0x8] sm:$0xff] %vm529, %v528
      %s532 = smul.u32 2, %s16
      %p533 = scmp.lt.s32.totalorder %s532, 3
      %s534 = scalar_select %p533, %s532, 3
      %s535 = smul.addr %s534, 8
      %s536 = scalar_lea.vmem %s5, %s535
      // Predicated region
      $region41: #{tpu_custom_call.1} parent=39 // pred_check
        %p537 = pneg %p144
      $region42: #{tpu_custom_call.1} parent=39 // pred_check_branch
        %539 = sbr.rel (%p537) target = $region44
      $region43: #{tpu_custom_call.1} parent=39 // pred_region
        %s540 = smul.u32 2, %s16
      $region44: #{tpu_custom_call.1} parent=39 // pred_fallthru
        _
    $region40: #{tpu_custom_call.1} parent=5 // pred_fallthru
      _
    %p541 = scmp.le.s32.totalorder 2, %s11
    // Predicated region
    $region45: #{tpu_custom_call.1} parent=5 // pred_check
      %p542 = pneg %p541
    $region46: #{tpu_custom_call.1} parent=5 // pred_check_branch
      %544 = sbr.rel (%p542) target = $region48
    $region47: #{tpu_custom_call.1} parent=5 // pred_region
      %s545 = ssub.s32 %s11, 2
      // Predicated region
      $region49: #{tpu_custom_call.1} parent=47 // pred_check
        %p546 = pneg %p150
      $region50: #{tpu_custom_call.1} parent=47 // pred_check_branch
        %548 = sbr.rel (%p546) target = $region52
      $region51: #{tpu_custom_call.1} parent=47 // pred_region
        %s549 = smul.u32 2, %s17
        %p550 = scmp.lt.s32.totalorder %s549, 3
        %s551 = scalar_select %p550, %s549, 3
        %s552 = smul.addr %s551, 8
        %s553 = scalar_lea.vmem %s5, %s552
      $region52: #{tpu_custom_call.1} parent=47 // pred_fallthru
        _
    $region48: #{tpu_custom_call.1} parent=5 // pred_fallthru
      _
  $region6: #{tpu_custom_call.1} parent=0 // loop_footer
    %s15 = sadd.s32 1, %s11
  $region7: #{tpu_custom_call.1} parent=0 // loop_footer_branch
    %10 = sbr.rel target = $region3
  $region8: #{tpu_custom_call.1} parent=0 // loop_exit
    _

// kernel: tpu_custom_call.1
$region0: #{tpu_custom_call.1}
  #allocation0 [shape = 'u32[]', space=smem, size = 0x4, offset = 0x4, fixed_abs, tag = 'smem constant byte address 0x4 - core index']
  #allocation1 [shape = 'u32[144,128]{1,0:T(1,128)}', space=vmem, size = 0x12000, scoped, tag = 'internal scratch']
  %s0 = inlined_call_operand.vmem [shape: f32[32,128], index: 0, kind: input, shape index: {}]
  %s1 = inlined_call_operand.vmem [shape: f32[128,100], index: 1, kind: input, shape index: {}]
  %s2 = inlined_call_operand.vmem [shape: f32[1,100], index: 2, kind: input, shape index: {}]
  %s3 = inlined_call_operand.vmem [shape: f32[100,2], index: 3, kind: input, shape index: {}]
  %s4 = inlined_call_operand.vmem [shape: f32[1,2], index: 4, kind: input, shape index: {}]
  %s5 = inlined_call_operand.vmem [shape: f32[32,2], index: 5, kind: output, shape index: {}]
  %s6 = sld [smem:[#allocation0]]
  $region53: #{tpu_custom_call.1} parent=0
    _
  %s8 = ssub.s32 1, %s6
  %s9 = scalar_select 0, %s8, %s6
  loop: start=0, step=1, limit=4
  $region2: #{tpu_custom_call.1} parent=0 // loop_pre_header
    _
  $region3: #{tpu_custom_call.1} parent=0 // loop_header
    %s11 = sphi 0, %s15
    %p12 = scmp.ge.s32.totalorder %s11, 4
    %s21 = sphi 0, %s23
    %s24 = sphi 0, %s21
    %s25 = sphi 0, %s24
    %s41 = sphi 0, %s25
    %s45 = sphi 0, %s45
    %s47 = sphi 0, %s45
    %s48 = sphi 0, %s47
    %s62 = sphi 0, %s48
    %s66 = sphi 0, %s66
    %s68 = sphi 0, %s66
    %s69 = sphi 0, %s68
    %s83 = sphi 0, %s69
    %s87 = sphi 0, %s87
    %s89 = sphi 0, %s87
    %s90 = sphi 0, %s89
    %s104 = sphi 0, %s90
    %s108 = sphi 0, %s108
    %s110 = sphi 0, %s108
    %s111 = sphi 0, %s110
    %s125 = sphi 0, %s111
    %s131 = sphi 0, %s133
    %s134 = sphi 0, %s131
    %s135 = sphi 0, %s134
    %s151 = sphi 0, %s135
  $region4: #{tpu_custom_call.1} parent=0 // loop_header_branch
    %14 = sbr.rel (%p12) target = $region8
  $region5: #{tpu_custom_call.1} parent=0 // loop_body
    %s16 = ssub.s32 %s11, 1
    %s17 = ssub.s32 %s11, 2
    %s18 = sadd.s32 %s11, 1
    %s19 = ssub.s32 %s11, %s18
    %p20 = scmp.eq.s32.totalorder %s19, 0
    %s22 = sadd.s32 %s21, 1
    %s23 = scalar_select %p20, %s21, %s22
    %p26 = pneg %p20
    %p27 = scmp.eq.s32.totalorder %s11, 1
    %p28 = por %p26, %p27
    %p29 = scmp.ne.s32.totalorder %s21, %s24
    %p30 = scmp.eq.s32.totalorder %s11, 0
    %p31 = por %p29, %p30
    %p32 = scmp.ne.s32.totalorder %s21, %s24
    %p33 = scmp.eq.s32.totalorder %s16, 1
    %p34 = por %p32, %p33
    %p35 = scmp.ne.s32.totalorder %s24, %s25
    %p36 = scmp.eq.s32.totalorder %s16, 0
    %p37 = por %p35, %p36
    %p38 = scmp.ne.s32.totalorder %s24, %s25
    %p39 = scmp.eq.s32.totalorder %s17, 1
    %p40 = por %p38, %p39
    %p42 = scmp.ne.s32.totalorder %s25, %s41
    %p43 = scmp.eq.s32.totalorder %s17, 0
    %p44 = por %p42, %p43
    %s46 = sadd.s32 %s45, 1
    %p49 = scmp.eq.s32.totalorder %s11, 1
    %p50 = scmp.ne.s32.totalorder %s45, %s47
    %p51 = scmp.eq.s32.totalorder %s11, 0
    %p52 = por %p50, %p51
    %p53 = scmp.ne.s32.totalorder %s45, %s47
    %p54 = scmp.eq.s32.totalorder %s16, 1
    %p55 = por %p53, %p54
    %p56 = scmp.ne.s32.totalorder %s47, %s48
    %p57 = scmp.eq.s32.totalorder %s16, 0
    %p58 = por %p56, %p57
    %p59 = scmp.ne.s32.totalorder %s47, %s48
    %p60 = scmp.eq.s32.totalorder %s17, 1
    %p61 = por %p59, %p60
    %p63 = scmp.ne.s32.totalorder %s48, %s62
    %p64 = scmp.eq.s32.totalorder %s17, 0
    %p65 = por %p63, %p64
    %s67 = sadd.s32 %s66, 1
    %p70 = scmp.eq.s32.totalorder %s11, 1
    %p71 = scmp.ne.s32.totalorder %s66, %s68
    %p72 = scmp.eq.s32.totalorder %s11, 0
    %p73 = por %p71, %p72
    %p74 = scmp.ne.s32.totalorder %s66, %s68
    %p75 = scmp.eq.s32.totalorder %s16, 1
    %p76 = por %p74, %p75
    %p77 = scmp.ne.s32.totalorder %s68, %s69
    %p78 = scmp.eq.s32.totalorder %s16, 0
    %p79 = por %p77, %p78
    %p80 = scmp.ne.s32.totalorder %s68, %s69
    %p81 = scmp.eq.s32.totalorder %s17, 1
    %p82 = por %p80, %p81
    %p84 = scmp.ne.s32.totalorder %s69, %s83
    %p85 = scmp.eq.s32.totalorder %s17, 0
    %p86 = por %p84, %p85
    %s88 = sadd.s32 %s87, 1
    %p91 = scmp.eq.s32.totalorder %s11, 1
    %p92 = scmp.ne.s32.totalorder %s87, %s89
    %p93 = scmp.eq.s32.totalorder %s11, 0
    %p94 = por %p92, %p93
    %p95 = scmp.ne.s32.totalorder %s87, %s89
    %p96 = scmp.eq.s32.totalorder %s16, 1
    %p97 = por %p95, %p96
    %p98 = scmp.ne.s32.totalorder %s89, %s90
    %p99 = scmp.eq.s32.totalorder %s16, 0
    %p100 = por %p98, %p99
    %p101 = scmp.ne.s32.totalorder %s89, %s90
    %p102 = scmp.eq.s32.totalorder %s17, 1
    %p103 = por %p101, %p102
    %p105 = scmp.ne.s32.totalorder %s90, %s104
    %p106 = scmp.eq.s32.totalorder %s17, 0
    %p107 = por %p105, %p106
    %s109 = sadd.s32 %s108, 1
    %p112 = scmp.eq.s32.totalorder %s11, 1
    %p113 = scmp.ne.s32.totalorder %s108, %s110
    %p114 = scmp.eq.s32.totalorder %s11, 0
    %p115 = por %p113, %p114
    %p116 = scmp.ne.s32.totalorder %s108, %s110
    %p117 = scmp.eq.s32.totalorder %s16, 1
    %p118 = por %p116, %p117
    %p119 = scmp.ne.s32.totalorder %s110, %s111
    %p120 = scmp.eq.s32.totalorder %s16, 0
    %p121 = por %p119, %p120
    %p122 = scmp.ne.s32.totalorder %s110, %s111
    %p123 = scmp.eq.s32.totalorder %s17, 1
    %p124 = por %p122, %p123
    %p126 = scmp.ne.s32.totalorder %s111, %s125
    %p127 = scmp.eq.s32.totalorder %s17, 0
    %p128 = por %p126, %p127
    %s129 = ssub.s32 %s11, %s18
    %p130 = scmp.eq.s32.totalorder %s129, 0
    %s132 = sadd.s32 %s131, 1
    %s133 = scalar_select %p130, %s131, %s132
    %p136 = pneg %p130
    %p137 = scmp.eq.s32.totalorder %s11, 1
    %p138 = por %p136, %p137
    %p139 = scmp.ne.s32.totalorder %s131, %s134
    %p140 = scmp.eq.s32.totalorder %s11, 0
    %p141 = por %p139, %p140
    %p142 = scmp.ne.s32.totalorder %s131, %s134
    %p143 = scmp.eq.s32.totalorder %s16, 1
    %p144 = por %p142, %p143
    %p145 = scmp.ne.s32.totalorder %s134, %s135
    %p146 = scmp.eq.s32.totalorder %s16, 0
    %p147 = por %p145, %p146
    %p148 = scmp.ne.s32.totalorder %s134, %s135
    %p149 = scmp.eq.s32.totalorder %s17, 1
    %p150 = por %p148, %p149
    %p152 = scmp.ne.s32.totalorder %s135, %s151
    %p153 = scmp.eq.s32.totalorder %s17, 0
    %p154 = por %p152, %p153
    %p155 = scmp.le.s32.totalorder 1, %s11
    %p156 = scmp.lt.s32.totalorder %s11, 3
    %p157 = pnand %p155, %p156
    %p158 = pneg %p157
    // Predicated region
    $region9: #{tpu_custom_call.1} parent=5 // pred_check
      _
    $region10: #{tpu_custom_call.1} parent=5 // pred_check_branch
      %160 = sbr.rel (%p157) target = $region12
    $region11: #{tpu_custom_call.1} parent=5 // pred_region
      %s161 = ssub.s32 %s11, 1
      // Predicated region
      $region13: #{tpu_custom_call.1} parent=11 // pred_check
        %p162 = pneg %p58
      $region14: #{tpu_custom_call.1} parent=11 // pred_check_branch
        %164 = sbr.rel (%p162) target = $region16
      $region15: #{tpu_custom_call.1} parent=11 // pred_region
        _
      $region16: #{tpu_custom_call.1} parent=11 // pred_fallthru
        _
      // Predicated region
      $region17: #{tpu_custom_call.1} parent=11 // pred_check
        %p165 = pneg %p79
      $region18: #{tpu_custom_call.1} parent=11 // pred_check_branch
        %167 = sbr.rel (%p165) target = $region20
      $region19: #{tpu_custom_call.1} parent=11 // pred_region
        _
      $region20: #{tpu_custom_call.1} parent=11 // pred_fallthru
        _
      // Predicated region
      $region21: #{tpu_custom_call.1} parent=11 // pred_check
        %p168 = pneg %p100
      $region22: #{tpu_custom_call.1} parent=11 // pred_check_branch
        %170 = sbr.rel (%p168) target = $region24
      $region23: #{tpu_custom_call.1} parent=11 // pred_region
        _
      $region24: #{tpu_custom_call.1} parent=11 // pred_fallthru
        _
      // Predicated region
      $region25: #{tpu_custom_call.1} parent=11 // pred_check
        %p171 = pneg %p121
      $region26: #{tpu_custom_call.1} parent=11 // pred_check_branch
        %173 = sbr.rel (%p171) target = $region28
      $region27: #{tpu_custom_call.1} parent=11 // pred_region
        _
      $region28: #{tpu_custom_call.1} parent=11 // pred_fallthru
        _
    $region12: #{tpu_custom_call.1} parent=5 // pred_fallthru
      _
    %p174 = scmp.lt.s32.totalorder %s11, 2
    // Predicated region
    $region29: #{tpu_custom_call.1} parent=5 // pred_check
      %p175 = pneg %p174
    $region30: #{tpu_custom_call.1} parent=5 // pred_check_branch
      %177 = sbr.rel (%p175) target = $region32
    $region31: #{tpu_custom_call.1} parent=5 // pred_region
      // Predicated region
      $region33: #{tpu_custom_call.1} parent=31 // pred_check
        %p178 = pneg %p31
      $region34: #{tpu_custom_call.1} parent=31 // pred_check_branch
        %180 = sbr.rel (%p178) target = $region36
      $region35: #{tpu_custom_call.1} parent=31 // pred_region
        %s181 = smul.u32 2, %s11
        %p182 = scmp.lt.s32.totalorder %s181, 3
        %s183 = scalar_select %p182, %s181, 3
        %s184 = smul.addr %s183, 8
        %s185 = scalar_lea.vmem %s0, %s184
        %s186 = smul.u32 2, %s11
      $region36: #{tpu_custom_call.1} parent=31 // pred_fallthru
        _
    $region32: #{tpu_custom_call.1} parent=5 // pred_fallthru
      _
    %p187 = scmp.le.s32.totalorder 1, %s11
    %p188 = scmp.lt.s32.totalorder %s11, 3
    %p189 = pnand %p187, %p188
    %p190 = pneg %p189
    // Predicated region
    $region37: #{tpu_custom_call.1} parent=5 // pred_check
      _
    $region38: #{tpu_custom_call.1} parent=5 // pred_check_branch
      %192 = sbr.rel (%p189) target = $region40
    $region39: #{tpu_custom_call.1} parent=5 // pred_region
      %s193 = ssub.s32 %s11, 1
      %s194 = smul.u32 2, %s16
      %p195 = scmp.lt.s32.totalorder %s194, 3
      %s196 = scalar_select %p195, %s194, 3
      %s197 = smul.addr %s196, 8
      %s198 = scalar_lea.vmem %s0, %s197
      %p199 = pneg %p37
      %p200 = pneg %p34
      %p201 = pneg %p58
      %p202 = pneg %p55
      %p203 = pneg %p79
      %p204 = pneg %p76
      %p205 = pneg %p100
      %p206 = pneg %p97
      %p207 = pneg %p121
      %p208 = pneg %p118
      %p209 = pneg %p147
      %p210 = pneg %p144
      %s211 = smul.u32 2, %s16
      %p212 = scmp.lt.s32.totalorder %s211, 3
      %s213 = scalar_select %p212, %s211, 3
      %s214 = smul.addr %s213, 8
      %s215 = scalar_lea.vmem %s5, %s214
      %s216 = smul.u32 2, %s16
      %p217 = scmp.lt.s32.totalorder %s216, 3
      %s218 = scalar_select %p217, %s216, 3
      %s219 = smul.addr %s218, 8
      %s220 = scalar_lea.vmem %s0, %s219
      %s221 = smul.u32 2, %s16
      %s222 = smul.u32 2, %s16
      %p223 = scmp.lt.s32.totalorder %s222, 3
      %s224 = scalar_select %p223, %s222, 3
      %s225 = smul.addr %s224, 8
      %s226 = scalar_lea.vmem %s5, %s225
      %s227 = smul.u32 2, %s16
      %v229 = vld [vmem:[%s220] sm:$0xff]
      %v230 = vld [vmem:[%s220 + $0x8] sm:$0xff]
      %v231 = vld [vmem:[%s1] sm:$0xff]
      %v232 = vld [vmem:[%s1 + $0x8] sm:$0xff]
      %v233 = vld [vmem:[%s1 + $0x10] sm:$0xff]
      %v234 = vld [vmem:[%s1 + $0x18] sm:$0xff]
      %v235 = vld [vmem:[%s1 + $0x20] sm:$0xff]
      %v236 = vld [vmem:[%s1 + $0x28] sm:$0xff]
      %v237 = vld [vmem:[%s1 + $0x30] sm:$0xff]
      %v238 = vld [vmem:[%s1 + $0x38] sm:$0xff]
      %v239 = vld [vmem:[%s1 + $0x40] sm:$0xff]
      %v240 = vld [vmem:[%s1 + $0x48] sm:$0xff]
      %v241 = vld [vmem:[%s1 + $0x50] sm:$0xff]
      %v242 = vld [vmem:[%s1 + $0x58] sm:$0xff]
      %v243 = vld [vmem:[%s1 + $0x60] sm:$0xff]
      %v244 = vld [vmem:[%s1 + $0x68] sm:$0xff]
      %v245 = vld [vmem:[%s1 + $0x70] sm:$0xff]
      %v246 = vld [vmem:[%s1 + $0x78] sm:$0xff]
      %v247 = vpack.c.bf16 %v230, %v229
      %v248 = vpack.c.bf16 %v232, %v231
      %v249 = vpack.c.bf16 %v234, %v233
      %v250 = vpack.c.bf16 %v236, %v235
      %v251 = vpack.c.bf16 %v238, %v237
      %v252 = vpack.c.bf16 %v240, %v239
      %v253 = vpack.c.bf16 %v242, %v241
      %v254 = vpack.c.bf16 %v244, %v243
      %v255 = vpack.c.bf16 %v246, %v245
      %v256 = vld [vmem:[%s2] sm:$0x1]
      %v258 = vlaneseq
      %v259 = vshrl.u32 %v258, 7
      %v260 = vsub.s32 0, %v259
      %v261 = vrot.slane %v256, %v260
      %263 = vmatprep.subr.bf16.mxu0 0
      %264 = vmatpush1.bf16.msra.mxu0 %v248
      %265 = vmatprep.subr.bf16.mxu0 0
      %266 = vmatpush1.bf16.msra.mxu0 %v249
      %267 = vmatprep.subr.bf16.mxu0 0
      %268 = vmatpush1.bf16.msra.mxu0 %v250
      %269 = vmatprep.subr.bf16.mxu0 0
      %270 = vmatpush1.bf16.msra.mxu0 %v251
      %271 = vmatprep.subr.bf16.mxu0 0
      %272 = vmatpush1.bf16.msra.mxu0 %v252
      %273 = vmatprep.subr.bf16.mxu0 0
      %274 = vmatpush1.bf16.msra.mxu0 %v253
      %275 = vmatprep.subr.bf16.mxu0 0
      %276 = vmatpush1.bf16.msra.mxu0 %v254
      %277 = vmatprep.subr.bf16.mxu0 0
      %278 = vmatpush1.bf16.msra.mxu0 %v255
      %279 = vmatprep.subr.bf16.mxu0 0
      %280 = vmatpush1.bf16.msra.mxu0 0
      %281 = vmatprep.subr.bf16.mxu0 0
      %282 = vmatpush1.bf16.msra.mxu0 0
      %283 = vmatprep.subr.bf16.mxu0 0
      %284 = vmatpush1.bf16.msra.mxu0 0
      %285 = vmatprep.subr.bf16.mxu0 0
      %286 = vmatpush1.bf16.msra.mxu0 0
      %287 = vmatprep.subr.bf16.mxu0 0
      %288 = vmatpush1.bf16.msra.mxu0 0
      %289 = vmatprep.subr.bf16.mxu0 0
      %290 = vmatpush1.bf16.msra.mxu0 0
      %291 = vmatprep.subr.bf16.mxu0 0
      %292 = vmatpush1.bf16.msra.mxu0 0
      %293 = vmatprep.subr.bf16.mxu0 0
      %294 = vmatpush1.bf16.msra.mxu0 0
      %295 = vmatprep.mubr.bf16.mxu0 0
      %296 = vmatmul.mubr.bf16.gmra.mrb[0].mxu0 %v247
      %v297 = vpop.f32.mrb[0].mxu0
      %v298 = vadd.f32 %v261, %v297
      %v299 = vpop.f32.mrb[0].mxu0
      %v300 = vpop.f32.mrb[0].mxu0
      %v301 = vadd.f32 %v261, %v300
      %v302 = vpop.f32.mrb[0].mxu0
      %303 = vdwg.mxu0
      %v304 = vmax.f32 %v298, 0.0
      %v305 = vmax.f32 %v301, 0.0
      %v306 = vld [vmem:[%s3] sm:$0xff]
      %v307 = vld [vmem:[%s3 + $0x8] sm:$0xff]
      %v308 = vld [vmem:[%s3 + $0x10] sm:$0xff]
      %v309 = vld [vmem:[%s3 + $0x18] sm:$0xff]
      %v310 = vld [vmem:[%s3 + $0x20] sm:$0xff]
      %v311 = vld [vmem:[%s3 + $0x28] sm:$0xff]
      %v312 = vld [vmem:[%s3 + $0x30] sm:$0xff]
      %v313 = vld [vmem:[%s3 + $0x38] sm:$0xff]
      %v314 = vld [vmem:[%s3 + $0x40] sm:$0xff]
      %v315 = vld [vmem:[%s3 + $0x48] sm:$0xff]
      %v316 = vld [vmem:[%s3 + $0x50] sm:$0xff]
      %v317 = vld [vmem:[%s3 + $0x58] sm:$0xff]
      %v318 = vld [vmem:[%s3 + $0x60] sm:$0xf]
      %332 = vrot.lane.b32.xlu0 %v306, 1
      %v333 = vpop.permute.xlu0 %332
      %334 = vrot.lane.b32.xlu0 %v307, 1
      %v335 = vpop.permute.xlu0 %334
      %336 = vrot.lane.b32.xlu0 %v308, 1
      %v337 = vpop.permute.xlu0 %336
      %338 = vrot.lane.b32.xlu0 %v309, 1
      %v339 = vpop.permute.xlu0 %338
      %340 = vrot.lane.b32.xlu0 %v310, 1
      %v341 = vpop.permute.xlu0 %340
      %342 = vrot.lane.b32.xlu0 %v311, 1
      %v343 = vpop.permute.xlu0 %342
      %344 = vrot.lane.b32.xlu0 %v312, 1
      %v345 = vpop.permute.xlu0 %344
      %346 = vrot.lane.b32.xlu0 %v313, 1
      %v347 = vpop.permute.xlu0 %346
      %348 = vrot.lane.b32.xlu0 %v314, 1
      %v349 = vpop.permute.xlu0 %348
      %350 = vrot.lane.b32.xlu0 %v315, 1
      %v351 = vpop.permute.xlu0 %350
      %352 = vrot.lane.b32.xlu0 %v316, 1
      %v353 = vpop.permute.xlu0 %352
      %354 = vrot.lane.b32.xlu0 %v317, 1
      %v355 = vpop.permute.xlu0 %354
      %356 = vrot.lane.b32.xlu0 %v318, 1
      %v357 = vpop.permute.xlu0 %356
      %v371 = vsub.f32 %v306, %v333
      %v372 = vsub.f32 %v307, %v335
      %v373 = vsub.f32 %v308, %v337
      %v374 = vsub.f32 %v309, %v339
      %v375 = vsub.f32 %v310, %v341
      %v376 = vsub.f32 %v311, %v343
      %v377 = vsub.f32 %v312, %v345
      %v378 = vsub.f32 %v313, %v347
      %v379 = vsub.f32 %v314, %v349
      %v380 = vsub.f32 %v315, %v351
      %v381 = vsub.f32 %v316, %v353
      %v382 = vsub.f32 %v317, %v355
      %v383 = vsub.f32 %v318, %v357
      %v384 = vld [vmem:[%s4] sm:$0x1]
      %386 = vrot.lane.b32.xlu0 %v384, 1
      %v387 = vpop.permute.xlu0 %386
      %v389 = vsub.f32 %v384, %v387
      %v390 = vpack.c.bf16 %v305, %v304
      %v391 = vpack.c.bf16 %v372, %v371
      %v392 = vpack.c.bf16 %v374, %v373
      %v393 = vpack.c.bf16 %v376, %v375
      %v394 = vpack.c.bf16 %v378, %v377
      %v395 = vpack.c.bf16 %v380, %v379
      %v396 = vpack.c.bf16 %v382, %v381
      %v397 = vpack.c.bf16 %v383, %v383
      %v399 = vlaneseq
      %v400 = vshrl.u32 %v399, 7
      %v401 = vsub.s32 0, %v400
      %v402 = vrot.slane %v389, %v401
      %410 = vrot.lane.b32.xlu0 %v391, 127
      %v411 = vpop.permute.xlu0 %410
      %412 = vrot.lane.b32.xlu0 %v392, 127
      %v413 = vpop.permute.xlu0 %412
      %414 = vrot.lane.b32.xlu0 %v393, 127
      %v415 = vpop.permute.xlu0 %414
      %416 = vrot.lane.b32.xlu0 %v394, 127
      %v417 = vpop.permute.xlu0 %416
      %418 = vrot.lane.b32.xlu0 %v395, 127
      %v419 = vpop.permute.xlu0 %418
      %420 = vrot.lane.b32.xlu0 %v396, 127
      %v421 = vpop.permute.xlu0 %420
      %422 = vrot.lane.b32.xlu0 %v397, 127
      %v423 = vpop.permute.xlu0 %422
      %430 = vrot.lane.b32.xlu0 %v402, 127
      %v431 = vpop.permute.xlu0 %430
      %vm433 = vcmask 818176
      %v435 = vsel %vm433, %v390, 0
      %vm437 = vcmask 1041408
      %v439 = vsel %vm437, %v423, 0
      %441 = vmatprep.subr.bf16.mxu0 0
      %442 = vmatpush1.bf16.msra.mxu0 %v411
      %443 = vmatprep.subr.bf16.mxu0 0
      %444 = vmatpush1.bf16.msra.mxu0 %v413
      %445 = vmatprep.subr.bf16.mxu0 0
      %446 = vmatpush1.bf16.msra.mxu0 %v415
      %447 = vmatprep.subr.bf16.mxu0 0
      %448 = vmatpush1.bf16.msra.mxu0 %v417
      %449 = vmatprep.subr.bf16.mxu0 0
      %450 = vmatpush1.bf16.msra.mxu0 %v419
      %451 = vmatprep.subr.bf16.mxu0 0
      %452 = vmatpush1.bf16.msra.mxu0 %v421
      %453 = vmatprep.subr.bf16.mxu0 0
      %454 = vmatpush1.bf16.msra.mxu0 %v439
      %455 = vmatprep.subr.bf16.mxu0 0
      %456 = vmatpush1.bf16.msra.mxu0 0
      %457 = vmatprep.subr.bf16.mxu0 0
      %458 = vmatpush1.bf16.msra.mxu0 0
      %459 = vmatprep.subr.bf16.mxu0 0
      %460 = vmatpush1.bf16.msra.mxu0 0
      %461 = vmatprep.subr.bf16.mxu0 0
      %462 = vmatpush1.bf16.msra.mxu0 0
      %463 = vmatprep.subr.bf16.mxu0 0
      %464 = vmatpush1.bf16.msra.mxu0 0
      %465 = vmatprep.subr.bf16.mxu0 0
      %466 = vmatpush1.bf16.msra.mxu0 0
      %467 = vmatprep.subr.bf16.mxu0 0
      %468 = vmatpush1.bf16.msra.mxu0 0
      %469 = vmatprep.subr.bf16.mxu0 0
      %470 = vmatpush1.bf16.msra.mxu0 0
      %471 = vmatprep.subr.bf16.mxu0 0
      %472 = vmatpush1.bf16.msra.mxu0 0
      %473 = vmatprep.mubr.bf16.mxu0 0
      %474 = vmatmul.mubr.bf16.gmra.mrb[0].mxu0 %v435
      %v475 = vpop.f32.mrb[0].mxu0
      %v476 = vadd.f32 %v431, %v475
      %v477 = vpop.f32.mrb[0].mxu0
      %v478 = vpop.f32.mrb[0].mxu0
      %v479 = vadd.f32 %v431, %v478
      %v480 = vpop.f32.mrb[0].mxu0
      %481 = vdwg.mxu0
      %v482 = vsub.f32 0.0, %v476
      %v483 = vsub.f32 0.0, %v479
      %v484 = vmul.f32 %v482, 1.442695
      %v485 = vpow.pop %v484
      %v486 = vmul.f32 %v483, 1.442695
      %v487 = vpow.pop %v486
      %v488 = vadd.f32 %v485, 1.0
      %v489 = vadd.f32 %v487, 1.0
      %v490 = vrcp.pop %v488
      %v491 = vmul.f32 1.0, %v490
      %v492 = vrcp.pop %v489
      %v493 = vmul.f32 1.0, %v492
      %v494 = vmul.f32 %v476, 1.442695
      %v495 = vpow.pop %v494
      %v496 = vmul.f32 %v479, 1.442695
      %v497 = vpow.pop %v496
      %v498 = vadd.f32 %v495, 1.0
      %v499 = vadd.f32 %v497, 1.0
      %v500 = vrcp.pop %v498
      %v501 = vmul.f32 1.0, %v500
      %v502 = vrcp.pop %v499
      %v503 = vmul.f32 1.0, %v502
      %v504 = vlaneseq
      %v505 = vand.u32 %v504, 127
      %vm506 = vcmp.eq.s32.totalorder %v505, 0
      %508 = vset.pattern.permute.xlu0 0
      %509 = vperm.xlu0 %508, %v501
      %v510 = vpop.permute.xlu0 %509
      %513 = vset.pattern.permute.xlu0 0
      %514 = vperm.xlu0 %513, %v503
      %v515 = vpop.permute.xlu0 %514
      %518 = vset.pattern.permute.xlu0 0
      %519 = vperm.xlu0 %518, %v491
      %v520 = vpop.permute.xlu0 %519
      %523 = vset.pattern.permute.xlu0 0
      %524 = vperm.xlu0 %523, %v493
      %v525 = vpop.permute.xlu0 %524
      %v527 = vsel %vm506, %v510, %v520
      %v528 = vsel %vm506, %v515, %v525
      %vm529 = vcmask 15360
      %530 = vst.msk [vmem:[%s226] sm:$0xff] %vm529, %v527
      %531 = vst.msk [vmem:[%s226 + $0x8] sm:$0xff] %vm529, %v528
      %s532 = smul.u32 2, %s16
      %p533 = scmp.lt.s32.totalorder %s532, 3
      %s534 = scalar_select %p533, %s532, 3
      %s535 = smul.addr %s534, 8
      %s536 = scalar_lea.vmem %s5, %s535
      // Predicated region
      $region41: #{tpu_custom_call.1} parent=39 // pred_check
        %p537 = pneg %p144
      $region42: #{tpu_custom_call.1} parent=39 // pred_check_branch
        %539 = sbr.rel (%p537) target = $region44
      $region43: #{tpu_custom_call.1} parent=39 // pred_region
        %s540 = smul.u32 2, %s16
      $region44: #{tpu_custom_call.1} parent=39 // pred_fallthru
        _
    $region40: #{tpu_custom_call.1} parent=5 // pred_fallthru
      _
    %p541 = scmp.le.s32.totalorder 2, %s11
    // Predicated region
    $region45: #{tpu_custom_call.1} parent=5 // pred_check
      %p542 = pneg %p541
    $region46: #{tpu_custom_call.1} parent=5 // pred_check_branch
      %544 = sbr.rel (%p542) target = $region48
    $region47: #{tpu_custom_call.1} parent=5 // pred_region
      %s545 = ssub.s32 %s11, 2
      // Predicated region
      $region49: #{tpu_custom_call.1} parent=47 // pred_check
        %p546 = pneg %p150
      $region50: #{tpu_custom_call.1} parent=47 // pred_check_branch
        %548 = sbr.rel (%p546) target = $region52
      $region51: #{tpu_custom_call.1} parent=47 // pred_region
        %s549 = smul.u32 2, %s17
        %p550 = scmp.lt.s32.totalorder %s549, 3
        %s551 = scalar_select %p550, %s549, 3
        %s552 = smul.addr %s551, 8
        %s553 = scalar_lea.vmem %s5, %s552
      $region52: #{tpu_custom_call.1} parent=47 // pred_fallthru
        _
    $region48: #{tpu_custom_call.1} parent=5 // pred_fallthru
      _
  $region6: #{tpu_custom_call.1} parent=0 // loop_footer
    %s15 = sadd.s32 1, %s11
  $region7: #{tpu_custom_call.1} parent=0 // loop_footer_branch
    %10 = sbr.rel target = $region3
  $region8: #{tpu_custom_call.1} parent=0 // loop_exit
    _

</llo_original>
